<compile_context>
chip_gen: v6e
topology: v6e:2x2x1
jax: 0.10.0
libtpu: 0.0.40
codegen_flags: <defaults>
</compile_context>

<pallas_src>
import math
import functools

import jax
import jax.numpy as jnp
from jax.experimental import pallas as pl
from jax.experimental.pallas import tpu as pltpu


# -----------------------------------------------------------------------------
# Fused per-(batch, head) attention kernel
# -----------------------------------------------------------------------------
def _downsample_attn_kernel(x_ref, w_ref, out_ref, cs_ref, *, dq, dk, dv):
    xb = x_ref[0]                                    # (C, N)
    w = w_ref[0]                                     # (dq+dk+dv, C); q rows pre-scaled

    # One fused 1x1-conv matmul for Q, K, V of this head (one MXU op instead of three).
    qkv = jnp.dot(w, xb, preferred_element_type=jnp.float32)        # (dq+dk+dv, N)
    q = qkv[:dq]                                     # (dq, N) -- 1/sqrt(dq) already folded in
    k = qkv[dq:dq + dk]                              # (dk, N)
    v = qkv[dq + dk:]                                # (dv, N)

    # energy[i, j] = sum_c q[c, i] * k[c, j]   (== q^T @ k)
    energy = jax.lax.dot_general(
        q, k, (((0,), (0,)), ((), ())), preferred_element_type=jnp.float32)   # (N, N)

    # Numerically-stable row softmax (dim=-1); divide = EUP reciprocal + VPU multiply.
    m = jnp.max(energy, axis=-1, keepdims=True)                      # (N, 1)
    e = jnp.exp(energy - m)
    denom = jnp.sum(e, axis=-1, keepdims=True)                       # (N, 1)
    att = e * pl.reciprocal(denom)                                   # (N, N)

    # Column sums (torch.sum(attention, dim=-2)) -- lane-dense (1, N) store.
    cs_ref[0, 0] = jnp.sum(att, axis=0, keepdims=True)

    # out_t[c, i] = sum_n v[c, n] * att[i, n]  (== (attention @ v^T)^T); N on lanes.
    out_ref[0, 0] = jax.lax.dot_general(
        v, att, (((1,), (1,)), ((), ())), preferred_element_type=jnp.float32)  # (dv, N)


def _fused_attention(x, w_qkv_h, dq, dk, dv):
    """x: (B, C, N); w_qkv_h: (H, dq+dk+dv, C).

    Returns (out_t (B,H,dv,N) == (attention @ v^T)^T, col_sum (B,H,1,N))."""
    B, C, N = x.shape
    H, d3, _ = w_qkv_h.shape

    kernel = functools.partial(_downsample_attn_kernel, dq=dq, dk=dk, dv=dv)
    return pl.pallas_call(
        kernel,
        out_shape=(
            jax.ShapeDtypeStruct((B, H, dv, N), jnp.float32),
            jax.ShapeDtypeStruct((B, H, 1, N), jnp.float32),
        ),
        grid=(B, H),
        in_specs=[
            pl.BlockSpec((1, C, N), lambda b, h: (b, 0, 0)),     # x (re-fetch elided while b fixed)
            pl.BlockSpec((1, d3, C), lambda b, h: (h, 0, 0)),    # stacked per-head QKV weights
        ],
        out_specs=(
            pl.BlockSpec((1, 1, dv, N), lambda b, h: (b, h, 0, 0)),
            pl.BlockSpec((1, 1, 1, N), lambda b, h: (b, h, 0, 0)),
        ),
        compiler_params=pltpu.CompilerParams(
            dimension_semantics=("parallel", "parallel"),
        ),
    )(x, w_qkv_h)


# -----------------------------------------------------------------------------
# Weight prep: stack per-head Q (pre-scaled), K, V weights into one matrix per head
# -----------------------------------------------------------------------------
def _prepare_weights(params, num_heads):
    wq, wk, wv = params["wq"], params["wk"], params["wv"]
    H = num_heads
    C = wq.shape[1]
    dq = wq.shape[0] // H
    dk = wk.shape[0] // H
    dv = wv.shape[0] // H
    # Fold the softmax scale 1/sqrt(q_depth) into the Q conv weights.
    wq_h = (wq.astype(jnp.float32) * (1.0 / math.sqrt(dq))).reshape(H, dq, C)
    wk_h = wk.astype(jnp.float32).reshape(H, dk, C)
    wv_h = wv.astype(jnp.float32).reshape(H, dv, C)
    w_qkv_h = jnp.concatenate([wq_h, wk_h, wv_h], axis=1)            # (H, dq+dk+dv, C)
    return w_qkv_h, dq, dk, dv


# -----------------------------------------------------------------------------
# Forward pass
# -----------------------------------------------------------------------------
def downsample_forward(params, x, *, M, num_heads):
    """DownSample.forward.

    params: dict with 'wq' (q_out, C), 'wk' (k_out, C), 'wv' (v_out, C)  (Conv1d k=1, no bias)
    x: (B, C, N) float32
    Returns ((v_down (B, v_out, M), idx (B, H, M)),
             (v_dropped (B, v_out, N-M), idx_dropped (B, H, N-M)))
    """
    B, C, N = x.shape
    H = num_heads
    w_qkv_h, dq, dk, dv = _prepare_weights(params, num_heads)

    out_t, col_sum = _fused_attention(x.astype(jnp.float32), w_qkv_h, dq, dk, dv)
    col_sum = col_sum.reshape(B, H, N)

    # top-M columns (largest) and bottom-(N-M) columns (smallest, ascending) -- XLA glue.
    _, idx = jax.lax.top_k(col_sum, M)                       # (B, H, M)
    _, idx_dropped = jax.lax.top_k(-col_sum, N - M)          # (B, H, N-M)

    # Row-gather of attention commutes with (attention @ v^T); gather columns of out_t.
    v_down = jnp.take_along_axis(out_t, idx[:, :, None, :], axis=3)              # (B,H,dv,M)
    v_dropped = jnp.take_along_axis(out_t, idx_dropped[:, :, None, :], axis=3)   # (B,H,dv,N-M)

    # (B, H, dv, *) -> (B, H*dv, *) == (B, v_out, *)  (matches torch permute/reshape chain)
    v_down = v_down.reshape(B, H * dv, M)
    v_dropped = v_dropped.reshape(B, H * dv, N - M)

    return (v_down, idx), (v_dropped, idx_dropped)


# -----------------------------------------------------------------------------
# Pure-JAX reference of the fused portion (pre-top-k), for numerics validation
# -----------------------------------------------------------------------------
def _reference_attention(params, x, num_heads):
    B, C, N = x.shape
    H = num_heads
    hp = jax.lax.Precision.HIGHEST
    wq = params["wq"].astype(jnp.float32)
    wk = params["wk"].astype(jnp.float32)
    wv = params["wv"].astype(jnp.float32)
    q = jnp.einsum("oc,bcn->bon", wq, x, precision=hp).reshape(B, H, -1, N)
    k = jnp.einsum("oc,bcn->bon", wk, x, precision=hp).reshape(B, H, -1, N)
    v = jnp.einsum("oc,bcn->bon", wv, x, precision=hp).reshape(B, H, -1, N)
    energy = jnp.einsum("bhci,bhcj->bhij", q, k, precision=hp) / math.sqrt(q.shape[2])
    att = jax.nn.softmax(energy, axis=-1)
    col_sum = jnp.sum(att, axis=-2)                                   # (B, H, N)
    out_t = jnp.einsum("bhij,bhcj->bhci", att, v, precision=hp)       # (B, H, dv, N)
    return out_t, col_sum


# -----------------------------------------------------------------------------
# Deterministic parameter init (matches PyTorch Conv1d(k=1, bias=False) shapes)
# -----------------------------------------------------------------------------
def init_downsample(key, q_in, q_out, k_out, v_out):
    k1, k2, k3 = jax.random.split(key, 3)
    bound = 1.0 / math.sqrt(q_in)
    return {
        "wq": jax.random.uniform(k1, (q_out, q_in), jnp.float32, -bound, bound),
        "wk": jax.random.uniform(k2, (k_out, q_in), jnp.float32, -bound, bound),
        "wv": jax.random.uniform(k3, (v_out, q_in), jnp.float32, -bound, bound),
    }


# -----------------------------------------------------------------------------
if __name__ == "__main__":
    key = jax.random.PRNGKey(0)
    k_param, k_data = jax.random.split(key)

    # Small shapes consistent with the module: (B, C, N) points, multi-head attention.
    B, C, N = 2, 32, 128
    Q_OUT = K_OUT = 64
    V_OUT = 64
    NUM_HEADS = 4
    M = 32

    params = init_downsample(k_param, C, Q_OUT, K_OUT, V_OUT)
    x = jax.random.normal(k_data, (B, C, N), dtype=jnp.float32)

    fwd = jax.jit(functools.partial(downsample_forward, M=M, num_heads=NUM_HEADS))
    (v_down, idx), (v_dropped, idx_dropped) = fwd(params, x)
    jax.block_until_ready(v_down)
    jax.block_until_ready(v_dropped)

    # Shape / sanity checks.
    assert v_down.shape == (B, V_OUT, M)
    assert idx.shape == (B, NUM_HEADS, M)
    assert v_dropped.shape == (B, V_OUT, N - M)
    assert idx_dropped.shape == (B, NUM_HEADS, N - M)
    assert bool(jnp.all(jnp.isfinite(v_down))) and bool(jnp.all(jnp.isfinite(v_dropped)))

    # Numerics check of the fused kernel against a pure-JAX reference.
    # (Pre-top-k tensors, so top_k tie-breaking cannot make the check flaky.)
    w_qkv_h, dq, dk, dv = _prepare_weights(params, NUM_HEADS)
    out_t, col_sum = _fused_attention(x, w_qkv_h, dq, dk, dv)
    col_sum = col_sum.reshape(B, NUM_HEADS, N)
    ref_out_t, ref_cs = _reference_attention(params, x, NUM_HEADS)
    jax.block_until_ready(out_t)
    assert jnp.allclose(out_t, ref_out_t, rtol=2e-3, atol=2e-3)
    assert jnp.allclose(col_sum, ref_cs, rtol=2e-3, atol=2e-3)

    print("KERNEL_OK")
</pallas_src>

<mosaic_0001>
module attributes {stable_mosaic.version = 11 : i64} {
  func.func @_downsample_attn_kernel(%arg0: i32, %arg1: i32, %arg2: memref<1x32x128xf32, #tpu.memory_space<vmem>>, %arg3: memref<1x48x32xf32, #tpu.memory_space<vmem>>, %arg4: memref<1x1x16x128xf32, #tpu.memory_space<vmem>>, %arg5: memref<1x1x1x128xf32, #tpu.memory_space<vmem>>) attributes {dimension_semantics = [#tpu.dimension_semantics<parallel>, #tpu.dimension_semantics<parallel>], iteration_bounds = array<i64: 2, 4>, scalar_prefetch = 0 : i64, scratch_operands = 0 : i64, tpu.core_type = #tpu.core_type<tc>, window_params = [{transform_indices = @transform_0, window_bounds = array<i64: 1, 32, 128>}, {transform_indices = @transform_1, window_bounds = array<i64: 1, 48, 32>}, {transform_indices = @transform_2, window_bounds = array<i64: 1, 1, 16, 128>}, {transform_indices = @transform_3, window_bounds = array<i64: 1, 1, 1, 128>}]} {
    %c0 = arith.constant 0 : index
    %c0_0 = arith.constant 0 : index
    %c0_1 = arith.constant 0 : index
    %0 = vector.load %arg2[%c0, %c0_0, %c0_1] : memref<1x32x128xf32, #tpu.memory_space<vmem>>, vector<1x32x128xf32>
    %1 = vector.shape_cast %0 : vector<1x32x128xf32> to vector<32x128xf32>
    %c0_2 = arith.constant 0 : index
    %c0_3 = arith.constant 0 : index
    %c0_4 = arith.constant 0 : index
    %2 = vector.load %arg3[%c0_2, %c0_3, %c0_4] : memref<1x48x32xf32, #tpu.memory_space<vmem>>, vector<1x48x32xf32>
    %3 = vector.shape_cast %2 : vector<1x48x32xf32> to vector<48x32xf32>
    %cst = arith.constant dense<0.000000e+00> : vector<48x128xf32>
    %4 = tpu.matmul %3, %1, %cst {dimension_numbers = #tpu.dot_dimension_numbers<[1], [0], [0], [1], [0, 0, 1, 1], [], []>} : vector<48x32xf32>, vector<32x128xf32>, vector<48x128xf32> -> vector<48x128xf32>
    %5 = vector.extract_strided_slice %4 {offsets = [0, 0], sizes = [16, 128], strides = [1, 1]} : vector<48x128xf32> to vector<16x128xf32>
    %6 = vector.extract_strided_slice %4 {offsets = [16, 0], sizes = [16, 128], strides = [1, 1]} : vector<48x128xf32> to vector<16x128xf32>
    %7 = vector.extract_strided_slice %4 {offsets = [32, 0], sizes = [16, 128], strides = [1, 1]} : vector<48x128xf32> to vector<16x128xf32>
    %cst_5 = arith.constant dense<0.000000e+00> : vector<128x128xf32>
    %8 = tpu.matmul %5, %6, %cst_5 {dimension_numbers = #tpu.dot_dimension_numbers<[0], [0], [1], [1], [0, 1, 1, 1], [], []>} : vector<16x128xf32>, vector<16x128xf32>, vector<128x128xf32> -> vector<128x128xf32>
    %cst_6 = arith.constant dense<0xFF800000> : vector<128xf32>
    %9 = vector.multi_reduction <maximumf>, %8, %cst_6 [1] : vector<128x128xf32> to vector<128xf32>
    %10 = vector.shape_cast %9 : vector<128xf32> to vector<128x1xf32>
    %11 = vector.broadcast %10 : vector<128x1xf32> to vector<128x128xf32>
    %12 = arith.subf %8, %11 : vector<128x128xf32>
    %13 = math.exp %12 : vector<128x128xf32>
    %cst_7 = arith.constant dense<0.000000e+00> : vector<128xf32>
    %14 = vector.multi_reduction <add>, %13, %cst_7 [1] : vector<128x128xf32> to vector<128xf32>
    %15 = vector.shape_cast %14 : vector<128xf32> to vector<128x1xf32>
    %16 = tpu.reciprocal %15 : vector<128x1xf32> -> vector<128x1xf32>
    %17 = vector.broadcast %16 : vector<128x1xf32> to vector<128x128xf32>
    %18 = arith.mulf %13, %17 : vector<128x128xf32>
    %cst_8 = arith.constant dense<0.000000e+00> : vector<128xf32>
    %19 = vector.multi_reduction <add>, %18, %cst_8 [0] : vector<128x128xf32> to vector<128xf32>
    %20 = vector.shape_cast %19 : vector<128xf32> to vector<1x128xf32>
    %c0_9 = arith.constant 0 : index
    %c0_10 = arith.constant 0 : index
    %c0_11 = arith.constant 0 : index
    %c0_12 = arith.constant 0 : index
    %21 = vector.load %arg5[%c0_9, %c0_10, %c0_11, %c0_12] : memref<1x1x1x128xf32, #tpu.memory_space<vmem>>, vector<1x1x1x128xf32>
    %22 = vector.shape_cast %21 : vector<1x1x1x128xf32> to vector<1x128xf32>
    %23 = vector.shape_cast %20 : vector<1x128xf32> to vector<1x1x1x128xf32>
    tpu.vector_store %arg5[%c0_9, %c0_10, %c0_11, %c0_12], %23 {strides = array<i32>} : memref<1x1x1x128xf32, #tpu.memory_space<vmem>>, vector<1x1x1x128xf32>,
    %cst_13 = arith.constant dense<0.000000e+00> : vector<16x128xf32>
    %24 = tpu.matmul %7, %18, %cst_13 {dimension_numbers = #tpu.dot_dimension_numbers<[1], [1], [0], [0], [0, 0, 1, 0], [], []>} : vector<16x128xf32>, vector<128x128xf32>, vector<16x128xf32> -> vector<16x128xf32>
    %c0_14 = arith.constant 0 : index
    %c0_15 = arith.constant 0 : index
    %c0_16 = arith.constant 0 : index
    %c0_17 = arith.constant 0 : index
    %25 = vector.load %arg4[%c0_14, %c0_15, %c0_16, %c0_17] : memref<1x1x16x128xf32, #tpu.memory_space<vmem>>, vector<1x1x16x128xf32>
    %26 = vector.shape_cast %25 : vector<1x1x16x128xf32> to vector<16x128xf32>
    %27 = vector.shape_cast %24 : vector<16x128xf32> to vector<1x1x16x128xf32>
    tpu.vector_store %arg4[%c0_14, %c0_15, %c0_16, %c0_17], %27 {strides = array<i32>} : memref<1x1x16x128xf32, #tpu.memory_space<vmem>>, vector<1x1x16x128xf32>,
    return
  }
  func.func @transform_0(%arg0: i32, %arg1: i32) -> (i32, i32, i32) {
    %c0_i32 = arith.constant 0 : i32
    %c0_i32_0 = arith.constant 0 : i32
    %c0_i32_1 = arith.constant 0 : i32
    return %arg0, %c0_i32, %c0_i32_0 : i32, i32, i32
  }
  func.func @transform_1(%arg0: i32, %arg1: i32) -> (i32, i32, i32) {
    %c0_i32 = arith.constant 0 : i32
    %c0_i32_0 = arith.constant 0 : i32
    %c0_i32_1 = arith.constant 0 : i32
    return %arg1, %c0_i32, %c0_i32_0 : i32, i32, i32
  }
  func.func @transform_2(%arg0: i32, %arg1: i32) -> (i32, i32, i32, i32) {
    %c0_i32 = arith.constant 0 : i32
    %c0_i32_0 = arith.constant 0 : i32
    %c0_i32_1 = arith.constant 0 : i32
    return %arg0, %arg1, %c0_i32, %c0_i32_0 : i32, i32, i32, i32
  }
  func.func @transform_3(%arg0: i32, %arg1: i32) -> (i32, i32, i32, i32) {
    %c0_i32 = arith.constant 0 : i32
    %c0_i32_0 = arith.constant 0 : i32
    %c0_i32_1 = arith.constant 0 : i32
    return %arg0, %arg1, %c0_i32, %c0_i32_0 : i32, i32, i32, i32
  }
}

</mosaic_0001>

<llo_original>
// kernel: neg.1
$region0: #{neg.1}
  #allocation0 [shape = 's32[1]{0}', space=sflag, size = 0x4, scoped, tag = 'scoped memory for neg.1']
  %s0 = inlined_call_operand.vmem [shape: f32[2,4,128], index: 0, kind: input, shape index: {}]
  %s1 = inlined_call_operand.vmem [shape: f32[2,4,128], index: 1, kind: output, shape index: {}]
  %v2 = vld [vmem:[%s0] sm:$0xf]
  %3 = xla_tuple %v2
  %4 = xla_tuple %3
  %v5 = vxor.u32 %v2, 2147483648
  %6 = xla_tuple %v5
  %7 = vst [vmem:[%s1] sm:$0xf] %v5
  %s8 = scalar_lea.vmem %s0, 4
  %v9 = vld [vmem:[%s8] sm:$0xf]
  %10 = xla_tuple %v9
  %11 = xla_tuple %10
  %v12 = vxor.u32 %v9, 2147483648
  %13 = xla_tuple %v12
  %s14 = scalar_lea.vmem %s1, 4
  %15 = vst [vmem:[%s14] sm:$0xf] %v12

// kernel: downsample_forward.1
$region0: #{downsample_forward.1}
  #allocation0 [shape = 'u32[]', space=smem, size = 0x4, offset = 0x4, fixed_abs, tag = 'smem constant byte address 0x4 - core index']
  #allocation1 [shape = 'u32[144,128]{1,0:T(1,128)}', space=vmem, size = 0x12000, scoped, tag = 'internal scratch']
  %s0 = inlined_call_operand.vmem [shape: f32[2,32,128], index: 0, kind: input, shape index: {}]
  %s1 = inlined_call_operand.vmem [shape: f32[4,48,32], index: 1, kind: input, shape index: {}]
  %s2 = inlined_call_operand.vmem [shape: f32[2,4,16,128], index: 2, kind: output, shape index: {0}]
  %s3 = inlined_call_operand.vmem [shape: f32[2,4,1,128], index: 3, kind: output, shape index: {1}]
  %4 = xla_tuple %s2, %s3
  %s5 = sld [smem:[#allocation0]]
  $region49: #{downsample_forward.1} parent=0
    _
  %s7 = ssub.s32 1, %s5
  %s8 = scalar_select 0, %s7, %s5
  loop: start=0, step=1, limit=10
  $region2: #{downsample_forward.1} parent=0 // loop_pre_header
    _
  $region3: #{downsample_forward.1} parent=0 // loop_header
    %s10 = sphi 0, %s14
    %p11 = scmp.ge.s32.totalorder %s10, 10
    %s17 = sphi 0, %s29
    %s18 = sphi 0, %s25
    %s19 = sphi 0, %s17
    %s20 = sphi 0, %s18
    %s21 = sphi 0, %s19
    %s22 = sphi 0, %s20
    %s32 = sphi 0, %s34
    %s35 = sphi 0, %s32
    %s36 = sphi 0, %s35
    %s52 = sphi 0, %s36
    %s58 = sphi 0, %s60
    %s61 = sphi 0, %s58
    %s62 = sphi 0, %s61
    %s78 = sphi 0, %s62
    %s86 = sphi 0, %s88
    %s89 = sphi 0, %s86
    %s90 = sphi 0, %s89
    %s106 = sphi 0, %s90
    %s114 = sphi 0, %s116
    %s117 = sphi 0, %s114
    %s118 = sphi 0, %s117
    %s134 = sphi 0, %s118
  $region4: #{downsample_forward.1} parent=0 // loop_header_branch
    %13 = sbr.rel (%p11) target = $region8
  $region5: #{downsample_forward.1} parent=0 // loop_body
    %s15 = ssub.s32 %s10, 1
    %s16 = ssub.s32 %s10, 2
    %s23 = sadd.s32 1, %s18
    %p24 = scmp.ge.s32.totalorder %s23, 4
    %s25 = scalar_select %p24, 0, %s23
    %s26 = sadd.s32 1, %s17
    %s27 = scalar_select %p24, %s26, %s17
    %p28 = scmp.ge.s32.totalorder %s27, 2
    %s29 = scalar_select %p28, 0, %s27
    %s30 = ssub.s32 %s17, %s29
    %p31 = scmp.eq.s32.totalorder %s30, 0
    %s33 = sadd.s32 %s32, 1
    %s34 = scalar_select %p31, %s32, %s33
    %p37 = pneg %p31
    %p38 = scmp.eq.s32.totalorder %s10, 7
    %p39 = por %p37, %p38
    %p40 = scmp.ne.s32.totalorder %s32, %s35
    %p41 = scmp.eq.s32.totalorder %s10, 0
    %p42 = por %p40, %p41
    %p43 = scmp.ne.s32.totalorder %s32, %s35
    %p44 = scmp.eq.s32.totalorder %s15, 7
    %p45 = por %p43, %p44
    %p46 = scmp.ne.s32.totalorder %s35, %s36
    %p47 = scmp.eq.s32.totalorder %s15, 0
    %p48 = por %p46, %p47
    %p49 = scmp.ne.s32.totalorder %s35, %s36
    %p50 = scmp.eq.s32.totalorder %s16, 7
    %p51 = por %p49, %p50
    %p53 = scmp.ne.s32.totalorder %s36, %s52
    %p54 = scmp.eq.s32.totalorder %s16, 0
    %p55 = por %p53, %p54
    %s56 = ssub.s32 %s18, %s25
    %p57 = scmp.eq.s32.totalorder %s56, 0
    %s59 = sadd.s32 %s58, 1
    %s60 = scalar_select %p57, %s58, %s59
    %p63 = pneg %p57
    %p64 = scmp.eq.s32.totalorder %s10, 7
    %p65 = por %p63, %p64
    %p66 = scmp.ne.s32.totalorder %s58, %s61
    %p67 = scmp.eq.s32.totalorder %s10, 0
    %p68 = por %p66, %p67
    %p69 = scmp.ne.s32.totalorder %s58, %s61
    %p70 = scmp.eq.s32.totalorder %s15, 7
    %p71 = por %p69, %p70
    %p72 = scmp.ne.s32.totalorder %s61, %s62
    %p73 = scmp.eq.s32.totalorder %s15, 0
    %p74 = por %p72, %p73
    %p75 = scmp.ne.s32.totalorder %s61, %s62
    %p76 = scmp.eq.s32.totalorder %s16, 7
    %p77 = por %p75, %p76
    %p79 = scmp.ne.s32.totalorder %s62, %s78
    %p80 = scmp.eq.s32.totalorder %s16, 0
    %p81 = por %p79, %p80
    %s82 = ssub.s32 %s17, %s29
    %s83 = ssub.s32 %s18, %s25
    %s84 = sor.u32 %s82, %s83
    %p85 = scmp.eq.s32.totalorder %s84, 0
    %s87 = sadd.s32 %s86, 1
    %s88 = scalar_select %p85, %s86, %s87
    %p91 = pneg %p85
    %p92 = scmp.eq.s32.totalorder %s10, 7
    %p93 = por %p91, %p92
    %p94 = scmp.ne.s32.totalorder %s86, %s89
    %p95 = scmp.eq.s32.totalorder %s10, 0
    %p96 = por %p94, %p95
    %p97 = scmp.ne.s32.totalorder %s86, %s89
    %p98 = scmp.eq.s32.totalorder %s15, 7
    %p99 = por %p97, %p98
    %p100 = scmp.ne.s32.totalorder %s89, %s90
    %p101 = scmp.eq.s32.totalorder %s15, 0
    %p102 = por %p100, %p101
    %p103 = scmp.ne.s32.totalorder %s89, %s90
    %p104 = scmp.eq.s32.totalorder %s16, 7
    %p105 = por %p103, %p104
    %p107 = scmp.ne.s32.totalorder %s90, %s106
    %p108 = scmp.eq.s32.totalorder %s16, 0
    %p109 = por %p107, %p108
    %s110 = ssub.s32 %s17, %s29
    %s111 = ssub.s32 %s18, %s25
    %s112 = sor.u32 %s110, %s111
    %p113 = scmp.eq.s32.totalorder %s112, 0
    %s115 = sadd.s32 %s114, 1
    %s116 = scalar_select %p113, %s114, %s115
    %p119 = pneg %p113
    %p120 = scmp.eq.s32.totalorder %s10, 7
    %p121 = por %p119, %p120
    %p122 = scmp.ne.s32.totalorder %s114, %s117
    %p123 = scmp.eq.s32.totalorder %s10, 0
    %p124 = por %p122, %p123
    %p125 = scmp.ne.s32.totalorder %s114, %s117
    %p126 = scmp.eq.s32.totalorder %s15, 7
    %p127 = por %p125, %p126
    %p128 = scmp.ne.s32.totalorder %s117, %s118
    %p129 = scmp.eq.s32.totalorder %s15, 0
    %p130 = por %p128, %p129
    %p131 = scmp.ne.s32.totalorder %s117, %s118
    %p132 = scmp.eq.s32.totalorder %s16, 7
    %p133 = por %p131, %p132
    %p135 = scmp.ne.s32.totalorder %s118, %s134
    %p136 = scmp.eq.s32.totalorder %s16, 0
    %p137 = por %p135, %p136
    %p138 = scmp.le.s32.totalorder 1, %s10
    %p139 = scmp.lt.s32.totalorder %s10, 9
    %p140 = pnand %p138, %p139
    %p141 = pneg %p140
    // Predicated region
    $region9: #{downsample_forward.1} parent=5 // pred_check
      _
    $region10: #{downsample_forward.1} parent=5 // pred_check_branch
      %143 = sbr.rel (%p140) target = $region12
    $region11: #{downsample_forward.1} parent=5 // pred_region
      %s144 = ssub.s32 %s10, 1
    $region12: #{downsample_forward.1} parent=5 // pred_fallthru
      _
    %p145 = scmp.lt.s32.totalorder %s10, 8
    // Predicated region
    $region13: #{downsample_forward.1} parent=5 // pred_check
      %p146 = pneg %p145
    $region14: #{downsample_forward.1} parent=5 // pred_check_branch
      %148 = sbr.rel (%p146) target = $region16
    $region15: #{downsample_forward.1} parent=5 // pred_region
      // Predicated region
      $region17: #{downsample_forward.1} parent=15 // pred_check
        %p149 = pneg %p42
      $region18: #{downsample_forward.1} parent=15 // pred_check_branch
        %151 = sbr.rel (%p149) target = $region20
      $region19: #{downsample_forward.1} parent=15 // pred_region
        %p152 = scmp.lt.s32.totalorder %s17, 1
        %s153 = scalar_select %p152, %s17, 1
        %s154 = smul.addr %s153, 4
        %s155 = smul.addr %s154, 8
        %s156 = scalar_lea.vmem %s0, %s155
      $region20: #{downsample_forward.1} parent=15 // pred_fallthru
        _
      // Predicated region
      $region21: #{downsample_forward.1} parent=15 // pred_check
        %p157 = pneg %p68
      $region22: #{downsample_forward.1} parent=15 // pred_check_branch
        %159 = sbr.rel (%p157) target = $region24
      $region23: #{downsample_forward.1} parent=15 // pred_region
        %p160 = scmp.lt.s32.totalorder %s18, 3
        %s161 = scalar_select %p160, %s18, 3
        %s162 = smul.addr %s161, 6
        %s163 = smul.addr %s162, 8
        %s164 = scalar_lea.vmem %s1, %s163
      $region24: #{downsample_forward.1} parent=15 // pred_fallthru
        _
    $region16: #{downsample_forward.1} parent=5 // pred_fallthru
      _
    %p165 = scmp.le.s32.totalorder 1, %s10
    %p166 = scmp.lt.s32.totalorder %s10, 9
    %p167 = pnand %p165, %p166
    %p168 = pneg %p167
    // Predicated region
    $region25: #{downsample_forward.1} parent=5 // pred_check
      _
    $region26: #{downsample_forward.1} parent=5 // pred_check_branch
      %170 = sbr.rel (%p167) target = $region28
    $region27: #{downsample_forward.1} parent=5 // pred_region
      %s171 = ssub.s32 %s10, 1
      %p172 = scmp.lt.s32.totalorder %s19, 1
      %s173 = scalar_select %p172, %s19, 1
      %s174 = smul.addr %s173, 4
      %s175 = smul.addr %s174, 8
      %s176 = scalar_lea.vmem %s0, %s175
      %p177 = pneg %p48
      %p178 = pneg %p45
      %p179 = scmp.lt.s32.totalorder %s20, 3
      %s180 = scalar_select %p179, %s20, 3
      %s181 = smul.addr %s180, 6
      %s182 = smul.addr %s181, 8
      %s183 = scalar_lea.vmem %s1, %s182
      %p184 = pneg %p74
      %p185 = pneg %p71
      %p186 = pneg %p102
      %p187 = pneg %p99
      %p188 = scmp.lt.s32.totalorder %s19, 1
      %s189 = scalar_select %p188, %s19, 1
      %p190 = scmp.lt.s32.totalorder %s20, 3
      %s191 = scalar_select %p190, %s20, 3
      %s192 = smul.addr %s191, 2
      %s193 = smul.addr %s189, 8
      %s194 = sadd.s32 %s192, %s193
      %s195 = smul.addr %s194, 8
      %s196 = scalar_lea.vmem %s2, %s195
      %p197 = pneg %p130
      %p198 = pneg %p127
      %p199 = scmp.lt.s32.totalorder %s19, 1
      %s200 = scalar_select %p199, %s19, 1
      %p201 = scmp.lt.s32.totalorder %s20, 3
      %s202 = scalar_select %p201, %s20, 3
      %s203 = smul.addr %s200, 4
      %s204 = sadd.s32 %s202, %s203
      %s205 = scalar_lea.vmem %s3, %s204
      %p206 = scmp.lt.s32.totalorder %s19, 1
      %s207 = scalar_select %p206, %s19, 1
      %s208 = smul.addr %s207, 4
      %s209 = smul.addr %s208, 8
      %s210 = scalar_lea.vmem %s0, %s209
      %p211 = scmp.lt.s32.totalorder %s20, 3
      %s212 = scalar_select %p211, %s20, 3
      %s213 = smul.addr %s212, 6
      %s214 = smul.addr %s213, 8
      %s215 = scalar_lea.vmem %s1, %s214
      %p216 = scmp.lt.s32.totalorder %s19, 1
      %s217 = scalar_select %p216, %s19, 1
      %p218 = scmp.lt.s32.totalorder %s20, 3
      %s219 = scalar_select %p218, %s20, 3
      %s220 = smul.addr %s219, 2
      %s221 = smul.addr %s217, 8
      %s222 = sadd.s32 %s220, %s221
      %s223 = smul.addr %s222, 8
      %s224 = scalar_lea.vmem %s2, %s223
      %p225 = scmp.lt.s32.totalorder %s19, 1
      %s226 = scalar_select %p225, %s19, 1
      %p227 = scmp.lt.s32.totalorder %s20, 3
      %s228 = scalar_select %p227, %s20, 3
      %s229 = smul.addr %s226, 4
      %s230 = sadd.s32 %s228, %s229
      %s231 = scalar_lea.vmem %s3, %s230
      %v232 = vld [vmem:[%s210] sm:$0xff]
      %v233 = vld [vmem:[%s210 + $0x8] sm:$0xff]
      %v234 = vld [vmem:[%s210 + $0x10] sm:$0xff]
      %v235 = vld [vmem:[%s210 + $0x18] sm:$0xff]
      %v236 = vld [vmem:[%s215] sm:$0xff]
      %v237 = vld [vmem:[%s215 + $0x8] sm:$0xff]
      %v238 = vld [vmem:[%s215 + $0x10] sm:$0xff]
      %v239 = vld [vmem:[%s215 + $0x18] sm:$0xff]
      %v240 = vld [vmem:[%s215 + $0x20] sm:$0xff]
      %v241 = vld [vmem:[%s215 + $0x28] sm:$0xff]
      %vm242 = vcmask 261120
      %v244 = vsel %vm242, %v236, 0
      %v247 = vsel %vm242, %v237, 0
      %v250 = vsel %vm242, %v238, 0
      %v253 = vsel %vm242, %v239, 0
      %v256 = vsel %vm242, %v240, 0
      %v259 = vsel %vm242, %v241, 0
      %261 = vmatprep.subr.mxu0 0.0
      %262 = vmatpush1.msra.mxu0 0.0
      %263 = vmatprep.subr.mxu0 0.0
      %264 = vmatpush1.msra.mxu0 0.0
      %265 = vmatprep.subr.mxu0 0.0
      %266 = vmatpush1.msra.mxu0 0.0
      %267 = vmatprep.subr.mxu0 0.0
      %268 = vmatpush1.msra.mxu0 0.0
      %269 = vmatprep.subr.mxu0 0.0
      %270 = vmatpush1.msra.mxu0 0.0
      %271 = vmatprep.subr.mxu0 0.0
      %272 = vmatpush1.msra.mxu0 0.0
      %273 = vmatprep.subr.mxu0 0.0
      %274 = vmatpush1.msra.mxu0 0.0
      %275 = vmatprep.subr.mxu0 0.0
      %276 = vmatpush1.msra.mxu0 0.0
      %277 = vmatprep.subr.mxu0 0.0
      %278 = vmatpush1.msra.mxu0 0.0
      %279 = vmatprep.subr.mxu0 0.0
      %280 = vmatpush1.msra.mxu0 0.0
      %281 = vmatprep.subr.mxu0 0.0
      %282 = vmatpush1.msra.mxu0 0.0
      %283 = vmatprep.subr.mxu0 0.0
      %284 = vmatpush1.msra.mxu0 0.0
      %285 = vmatprep.subr.mxu0 0.0
      %286 = vmatpush1.msra.mxu0 %v235
      %287 = vmatprep.subr.mxu0 0.0
      %288 = vmatpush1.msra.mxu0 %v234
      %289 = vmatprep.subr.mxu0 0.0
      %290 = vmatpush1.msra.mxu0 %v233
      %291 = vmatprep.subr.mxu0 0.0
      %292 = vmatpush1.msra.mxu0 %v232
      %293 = vmatprep.subr.mxu0 0.0
      %294 = vmatpush2.msra.mxu0 0.0
      %295 = vmatprep.subr.mxu0 0.0
      %296 = vmatpush2.msra.mxu0 0.0
      %297 = vmatprep.subr.mxu0 0.0
      %298 = vmatpush2.msra.mxu0 0.0
      %299 = vmatprep.subr.mxu0 0.0
      %300 = vmatpush2.msra.mxu0 0.0
      %301 = vmatprep.subr.mxu0 0.0
      %302 = vmatpush2.msra.mxu0 0.0
      %303 = vmatprep.subr.mxu0 0.0
      %304 = vmatpush2.msra.mxu0 0.0
      %305 = vmatprep.subr.mxu0 0.0
      %306 = vmatpush2.msra.mxu0 0.0
      %307 = vmatprep.subr.mxu0 0.0
      %308 = vmatpush2.msra.mxu0 0.0
      %309 = vmatprep.subr.mxu0 0.0
      %310 = vmatpush2.msra.mxu0 0.0
      %311 = vmatprep.subr.mxu0 0.0
      %312 = vmatpush2.msra.mxu0 0.0
      %313 = vmatprep.subr.mxu0 0.0
      %314 = vmatpush2.msra.mxu0 0.0
      %315 = vmatprep.subr.mxu0 0.0
      %316 = vmatpush2.msra.mxu0 0.0
      %317 = vmatprep.subr.mxu0 0.0
      %318 = vmatpush2.msra.mxu0 0.0
      %319 = vmatprep.subr.mxu0 0.0
      %320 = vmatpush2.msra.mxu0 0.0
      %321 = vmatprep.subr.mxu0 0.0
      %322 = vmatpush2.msra.mxu0 0.0
      %323 = vmatprep.subr.mxu0 0.0
      %324 = vmatpush2.msra.mxu0 0.0
      %325 = vmatprep.mubr.f32.mxu0 0.0
      %326 = vmatmul.mubr.f32.gmra.mxu0 %v244
      %v327 = vpop.f32.mrf.mxu0
      %v328 = vadd.f32 0.0, %v327
      %v329 = vpop.f32.mrf.mxu0
      %330 = vmatprep.mubr.f32.mxu0 0.0
      %331 = vmatmul.mubr.f32.gmra.mxu0 %v247
      %v332 = vpop.f32.mrf.mxu0
      %v333 = vadd.f32 0.0, %v332
      %v334 = vpop.f32.mrf.mxu0
      %335 = vmatprep.mubr.f32.mxu0 0.0
      %336 = vmatmul.mubr.f32.gmra.mxu0 %v250
      %v337 = vpop.f32.mrf.mxu0
      %v338 = vadd.f32 0.0, %v337
      %v339 = vpop.f32.mrf.mxu0
      %340 = vmatprep.mubr.f32.mxu0 0.0
      %341 = vmatmul.mubr.f32.gmra.mxu0 %v253
      %v342 = vpop.f32.mrf.mxu0
      %v343 = vadd.f32 0.0, %v342
      %v344 = vpop.f32.mrf.mxu0
      %345 = vmatprep.mubr.f32.mxu0 0.0
      %346 = vmatmul.mubr.f32.gmra.mxu0 %v256
      %v347 = vpop.f32.mrf.mxu0
      %v348 = vadd.f32 0.0, %v347
      %v349 = vpop.f32.mrf.mxu0
      %350 = vmatprep.mubr.f32.mxu0 0.0
      %351 = vmatmul.mubr.f32.gmra.mxu0 %v259
      %v352 = vpop.f32.mrf.mxu0
      %v353 = vadd.f32 0.0, %v352
      %v354 = vpop.f32.mrf.mxu0
      %355 = vdwg.mxu0
      %356 = vxpose.xlu0.b32.start [1/16] %v328, 128
      %357 = vxpose.xlu0.b32.cont [2/16] %v333, 128
      %358 = vxpose.xlu0.b32.cont [3/16] 0.0, 128
      %359 = vxpose.xlu0.b32.cont [4/16] 0.0, 128
      %360 = vxpose.xlu0.b32.cont [5/16] 0.0, 128
      %361 = vxpose.xlu0.b32.cont [6/16] 0.0, 128
      %362 = vxpose.xlu0.b32.cont [7/16] 0.0, 128
      %363 = vxpose.xlu0.b32.cont [8/16] 0.0, 128
      %364 = vxpose.xlu0.b32.cont [9/16] 0.0, 128
      %365 = vxpose.xlu0.b32.cont [10/16] 0.0, 128
      %366 = vxpose.xlu0.b32.cont [11/16] 0.0, 128
      %367 = vxpose.xlu0.b32.cont [12/16] 0.0, 128
      %368 = vxpose.xlu0.b32.cont [13/16] 0.0, 128
      %369 = vxpose.xlu0.b32.cont [14/16] 0.0, 128
      %370 = vxpose.xlu0.b32.cont [15/16] 0.0, 128
      %371 = vxpose.xlu0.b32.end [16/16] 0.0, 128
      %v372 = vpop.trf.xlu0
      %v373 = vpop.trf.xlu0
      %v374 = vpop.trf.xlu0
      %v375 = vpop.trf.xlu0
      %v376 = vpop.trf.xlu0
      %v377 = vpop.trf.xlu0
      %v378 = vpop.trf.xlu0
      %v379 = vpop.trf.xlu0
      %v380 = vpop.trf.xlu0
      %v381 = vpop.trf.xlu0
      %v382 = vpop.trf.xlu0
      %v383 = vpop.trf.xlu0
      %v384 = vpop.trf.xlu0
      %v385 = vpop.trf.xlu0
      %v386 = vpop.trf.xlu0
      %v387 = vpop.trf.xlu0
      %vm388 = vcmask 130048
      %v390 = vsel %vm388, %v372, 0
      %v393 = vsel %vm388, %v373, 0
      %v396 = vsel %vm388, %v374, 0
      %v399 = vsel %vm388, %v375, 0
      %v402 = vsel %vm388, %v376, 0
      %v405 = vsel %vm388, %v377, 0
      %v408 = vsel %vm388, %v378, 0
      %v411 = vsel %vm388, %v379, 0
      %v414 = vsel %vm388, %v380, 0
      %v417 = vsel %vm388, %v381, 0
      %v420 = vsel %vm388, %v382, 0
      %v423 = vsel %vm388, %v383, 0
      %v426 = vsel %vm388, %v384, 0
      %v429 = vsel %vm388, %v385, 0
      %v432 = vsel %vm388, %v386, 0
      %v435 = vsel %vm388, %v387, 0
      %437 = vmatprep.subr.mxu0 0.0
      %438 = vmatpush1.msra.mxu0 0.0
      %439 = vmatprep.subr.mxu0 0.0
      %440 = vmatpush1.msra.mxu0 0.0
      %441 = vmatprep.subr.mxu0 0.0
      %442 = vmatpush1.msra.mxu0 0.0
      %443 = vmatprep.subr.mxu0 0.0
      %444 = vmatpush1.msra.mxu0 0.0
      %445 = vmatprep.subr.mxu0 0.0
      %446 = vmatpush1.msra.mxu0 0.0
      %447 = vmatprep.subr.mxu0 0.0
      %448 = vmatpush1.msra.mxu0 0.0
      %449 = vmatprep.subr.mxu0 0.0
      %450 = vmatpush1.msra.mxu0 0.0
      %451 = vmatprep.subr.mxu0 0.0
      %452 = vmatpush1.msra.mxu0 0.0
      %453 = vmatprep.subr.mxu0 0.0
      %454 = vmatpush1.msra.mxu0 0.0
      %455 = vmatprep.subr.mxu0 0.0
      %456 = vmatpush1.msra.mxu0 0.0
      %457 = vmatprep.subr.mxu0 0.0
      %458 = vmatpush1.msra.mxu0 0.0
      %459 = vmatprep.subr.mxu0 0.0
      %460 = vmatpush1.msra.mxu0 0.0
      %461 = vmatprep.subr.mxu0 0.0
      %462 = vmatpush1.msra.mxu0 0.0
      %463 = vmatprep.subr.mxu0 0.0
      %464 = vmatpush1.msra.mxu0 0.0
      %465 = vmatprep.subr.mxu0 0.0
      %466 = vmatpush1.msra.mxu0 %v343
      %467 = vmatprep.subr.mxu0 0.0
      %468 = vmatpush1.msra.mxu0 %v338
      %469 = vmatprep.subr.mxu0 0.0
      %470 = vmatpush2.msra.mxu0 0.0
      %471 = vmatprep.subr.mxu0 0.0
      %472 = vmatpush2.msra.mxu0 0.0
      %473 = vmatprep.subr.mxu0 0.0
      %474 = vmatpush2.msra.mxu0 0.0
      %475 = vmatprep.subr.mxu0 0.0
      %476 = vmatpush2.msra.mxu0 0.0
      %477 = vmatprep.subr.mxu0 0.0
      %478 = vmatpush2.msra.mxu0 0.0
      %479 = vmatprep.subr.mxu0 0.0
      %480 = vmatpush2.msra.mxu0 0.0
      %481 = vmatprep.subr.mxu0 0.0
      %482 = vmatpush2.msra.mxu0 0.0
      %483 = vmatprep.subr.mxu0 0.0
      %484 = vmatpush2.msra.mxu0 0.0
      %485 = vmatprep.subr.mxu0 0.0
      %486 = vmatpush2.msra.mxu0 0.0
      %487 = vmatprep.subr.mxu0 0.0
      %488 = vmatpush2.msra.mxu0 0.0
      %489 = vmatprep.subr.mxu0 0.0
      %490 = vmatpush2.msra.mxu0 0.0
      %491 = vmatprep.subr.mxu0 0.0
      %492 = vmatpush2.msra.mxu0 0.0
      %493 = vmatprep.subr.mxu0 0.0
      %494 = vmatpush2.msra.mxu0 0.0
      %495 = vmatprep.subr.mxu0 0.0
      %496 = vmatpush2.msra.mxu0 0.0
      %497 = vmatprep.subr.mxu0 0.0
      %498 = vmatpush2.msra.mxu0 0.0
      %499 = vmatprep.subr.mxu0 0.0
      %500 = vmatpush2.msra.mxu0 0.0
      %501 = vmatprep.mubr.f32.mxu0 0.0
      %502 = vmatmul.mubr.f32.gmra.mxu0 %v390
      %v503 = vpop.f32.mrf.mxu0
      %v504 = vadd.f32 0.0, %v503
      %v505 = vpop.f32.mrf.mxu0
      %506 = vmatprep.mubr.f32.mxu0 0.0
      %507 = vmatmul.mubr.f32.gmra.mxu0 %v393
      %v508 = vpop.f32.mrf.mxu0
      %v509 = vadd.f32 0.0, %v508
      %v510 = vpop.f32.mrf.mxu0
      %511 = vmatprep.mubr.f32.mxu0 0.0
      %512 = vmatmul.mubr.f32.gmra.mxu0 %v396
      %v513 = vpop.f32.mrf.mxu0
      %v514 = vadd.f32 0.0, %v513
      %v515 = vpop.f32.mrf.mxu0
      %516 = vmatprep.mubr.f32.mxu0 0.0
      %517 = vmatmul.mubr.f32.gmra.mxu0 %v399
      %v518 = vpop.f32.mrf.mxu0
      %v519 = vadd.f32 0.0, %v518
      %v520 = vpop.f32.mrf.mxu0
      %521 = vmatprep.mubr.f32.mxu0 0.0
      %522 = vmatmul.mubr.f32.gmra.mxu0 %v402
      %v523 = vpop.f32.mrf.mxu0
      %v524 = vadd.f32 0.0, %v523
      %v525 = vpop.f32.mrf.mxu0
      %526 = vmatprep.mubr.f32.mxu0 0.0
      %527 = vmatmul.mubr.f32.gmra.mxu0 %v405
      %v528 = vpop.f32.mrf.mxu0
      %v529 = vadd.f32 0.0, %v528
      %v530 = vpop.f32.mrf.mxu0
      %531 = vmatprep.mubr.f32.mxu0 0.0
      %532 = vmatmul.mubr.f32.gmra.mxu0 %v408
      %v533 = vpop.f32.mrf.mxu0
      %v534 = vadd.f32 0.0, %v533
      %v535 = vpop.f32.mrf.mxu0
      %536 = vmatprep.mubr.f32.mxu0 0.0
      %537 = vmatmul.mubr.f32.gmra.mxu0 %v411
      %v538 = vpop.f32.mrf.mxu0
      %v539 = vadd.f32 0.0, %v538
      %v540 = vpop.f32.mrf.mxu0
      %541 = vmatprep.mubr.f32.mxu0 0.0
      %542 = vmatmul.mubr.f32.gmra.mxu0 %v414
      %v543 = vpop.f32.mrf.mxu0
      %v544 = vadd.f32 0.0, %v543
      %v545 = vpop.f32.mrf.mxu0
      %546 = vmatprep.mubr.f32.mxu0 0.0
      %547 = vmatmul.mubr.f32.gmra.mxu0 %v417
      %v548 = vpop.f32.mrf.mxu0
      %v549 = vadd.f32 0.0, %v548
      %v550 = vpop.f32.mrf.mxu0
      %551 = vmatprep.mubr.f32.mxu0 0.0
      %552 = vmatmul.mubr.f32.gmra.mxu0 %v420
      %v553 = vpop.f32.mrf.mxu0
      %v554 = vadd.f32 0.0, %v553
      %v555 = vpop.f32.mrf.mxu0
      %556 = vmatprep.mubr.f32.mxu0 0.0
      %557 = vmatmul.mubr.f32.gmra.mxu0 %v423
      %v558 = vpop.f32.mrf.mxu0
      %v559 = vadd.f32 0.0, %v558
      %v560 = vpop.f32.mrf.mxu0
      %561 = vmatprep.mubr.f32.mxu0 0.0
      %562 = vmatmul.mubr.f32.gmra.mxu0 %v426
      %v563 = vpop.f32.mrf.mxu0
      %v564 = vadd.f32 0.0, %v563
      %v565 = vpop.f32.mrf.mxu0
      %566 = vmatprep.mubr.f32.mxu0 0.0
      %567 = vmatmul.mubr.f32.gmra.mxu0 %v429
      %v568 = vpop.f32.mrf.mxu0
      %v569 = vadd.f32 0.0, %v568
      %v570 = vpop.f32.mrf.mxu0
      %571 = vmatprep.mubr.f32.mxu0 0.0
      %572 = vmatmul.mubr.f32.gmra.mxu0 %v432
      %v573 = vpop.f32.mrf.mxu0
      %v574 = vadd.f32 0.0, %v573
      %v575 = vpop.f32.mrf.mxu0
      %576 = vmatprep.mubr.f32.mxu0 0.0
      %577 = vmatmul.mubr.f32.gmra.mxu0 %v435
      %v578 = vpop.f32.mrf.mxu0
      %v579 = vadd.f32 0.0, %v578
      %v580 = vpop.f32.mrf.mxu0
      %581 = vdwg.mxu0
      %582 = vmax.xlane.f32.xlu0 %v504
      %v583 = vpop.xlane.xlu0 %582
      %584 = vmax.xlane.f32.xlu0 %v509
      %v585 = vpop.xlane.xlu0 %584
      %586 = vmax.xlane.f32.xlu0 %v514
      %v587 = vpop.xlane.xlu0 %586
      %588 = vmax.xlane.f32.xlu0 %v519
      %v589 = vpop.xlane.xlu0 %588
      %590 = vmax.xlane.f32.xlu0 %v524
      %v591 = vpop.xlane.xlu0 %590
      %592 = vmax.xlane.f32.xlu0 %v529
      %v593 = vpop.xlane.xlu0 %592
      %594 = vmax.xlane.f32.xlu0 %v534
      %v595 = vpop.xlane.xlu0 %594
      %596 = vmax.xlane.f32.xlu0 %v539
      %v597 = vpop.xlane.xlu0 %596
      %598 = vmax.xlane.f32.xlu0 %v544
      %v599 = vpop.xlane.xlu0 %598
      %600 = vmax.xlane.f32.xlu0 %v549
      %v601 = vpop.xlane.xlu0 %600
      %602 = vmax.xlane.f32.xlu0 %v554
      %v603 = vpop.xlane.xlu0 %602
      %604 = vmax.xlane.f32.xlu0 %v559
      %v605 = vpop.xlane.xlu0 %604
      %606 = vmax.xlane.f32.xlu0 %v564
      %v607 = vpop.xlane.xlu0 %606
      %608 = vmax.xlane.f32.xlu0 %v569
      %v609 = vpop.xlane.xlu0 %608
      %610 = vmax.xlane.f32.xlu0 %v574
      %v611 = vpop.xlane.xlu0 %610
      %612 = vmax.xlane.f32.xlu0 %v579
      %v613 = vpop.xlane.xlu0 %612
      %v614 = vsub.f32 %v504, %v583
      %v615 = vsub.f32 %v509, %v585
      %v616 = vsub.f32 %v514, %v587
      %v617 = vsub.f32 %v519, %v589
      %v618 = vsub.f32 %v524, %v591
      %v619 = vsub.f32 %v529, %v593
      %v620 = vsub.f32 %v534, %v595
      %v621 = vsub.f32 %v539, %v597
      %v622 = vsub.f32 %v544, %v599
      %v623 = vsub.f32 %v549, %v601
      %v624 = vsub.f32 %v554, %v603
      %v625 = vsub.f32 %v559, %v605
      %v626 = vsub.f32 %v564, %v607
      %v627 = vsub.f32 %v569, %v609
      %v628 = vsub.f32 %v574, %v611
      %v629 = vsub.f32 %v579, %v613
      %v630 = vmul.f32 %v614, 1.442695
      %v631 = vpow.pop %v630
      %v632 = vmul.f32 %v615, 1.442695
      %v633 = vpow.pop %v632
      %v634 = vmul.f32 %v616, 1.442695
      %v635 = vpow.pop %v634
      %v636 = vmul.f32 %v617, 1.442695
      %v637 = vpow.pop %v636
      %v638 = vmul.f32 %v618, 1.442695
      %v639 = vpow.pop %v638
      %v640 = vmul.f32 %v619, 1.442695
      %v641 = vpow.pop %v640
      %v642 = vmul.f32 %v620, 1.442695
      %v643 = vpow.pop %v642
      %v644 = vmul.f32 %v621, 1.442695
      %v645 = vpow.pop %v644
      %v646 = vmul.f32 %v622, 1.442695
      %v647 = vpow.pop %v646
      %v648 = vmul.f32 %v623, 1.442695
      %v649 = vpow.pop %v648
      %v650 = vmul.f32 %v624, 1.442695
      %v651 = vpow.pop %v650
      %v652 = vmul.f32 %v625, 1.442695
      %v653 = vpow.pop %v652
      %v654 = vmul.f32 %v626, 1.442695
      %v655 = vpow.pop %v654
      %v656 = vmul.f32 %v627, 1.442695
      %v657 = vpow.pop %v656
      %v658 = vmul.f32 %v628, 1.442695
      %v659 = vpow.pop %v658
      %v660 = vmul.f32 %v629, 1.442695
      %v661 = vpow.pop %v660
      %662 = vadd.xlane.f32.xlu0 %v631
      %v663 = vpop.xlane.xlu0 %662
      %664 = vadd.xlane.f32.xlu0 %v633
      %v665 = vpop.xlane.xlu0 %664
      %666 = vadd.xlane.f32.xlu0 %v635
      %v667 = vpop.xlane.xlu0 %666
      %668 = vadd.xlane.f32.xlu0 %v637
      %v669 = vpop.xlane.xlu0 %668
      %670 = vadd.xlane.f32.xlu0 %v639
      %v671 = vpop.xlane.xlu0 %670
      %672 = vadd.xlane.f32.xlu0 %v641
      %v673 = vpop.xlane.xlu0 %672
      %674 = vadd.xlane.f32.xlu0 %v643
      %v675 = vpop.xlane.xlu0 %674
      %676 = vadd.xlane.f32.xlu0 %v645
      %v677 = vpop.xlane.xlu0 %676
      %678 = vadd.xlane.f32.xlu0 %v647
      %v679 = vpop.xlane.xlu0 %678
      %680 = vadd.xlane.f32.xlu0 %v649
      %v681 = vpop.xlane.xlu0 %680
      %682 = vadd.xlane.f32.xlu0 %v651
      %v683 = vpop.xlane.xlu0 %682
      %684 = vadd.xlane.f32.xlu0 %v653
      %v685 = vpop.xlane.xlu0 %684
      %686 = vadd.xlane.f32.xlu0 %v655
      %v687 = vpop.xlane.xlu0 %686
      %688 = vadd.xlane.f32.xlu0 %v657
      %v689 = vpop.xlane.xlu0 %688
      %690 = vadd.xlane.f32.xlu0 %v659
      %v691 = vpop.xlane.xlu0 %690
      %692 = vadd.xlane.f32.xlu0 %v661
      %v693 = vpop.xlane.xlu0 %692
      %v694 = vrcp.pop %v663
      %v695 = vrcp.pop %v665
      %v696 = vrcp.pop %v667
      %v697 = vrcp.pop %v669
      %v698 = vrcp.pop %v671
      %v699 = vrcp.pop %v673
      %v700 = vrcp.pop %v675
      %v701 = vrcp.pop %v677
      %v702 = vrcp.pop %v679
      %v703 = vrcp.pop %v681
      %v704 = vrcp.pop %v683
      %v705 = vrcp.pop %v685
      %v706 = vrcp.pop %v687
      %v707 = vrcp.pop %v689
      %v708 = vrcp.pop %v691
      %v709 = vrcp.pop %v693
      %v710 = vmul.f32 %v631, %v694
      %v711 = vmul.f32 %v633, %v695
      %v712 = vmul.f32 %v635, %v696
      %v713 = vmul.f32 %v637, %v697
      %v714 = vmul.f32 %v639, %v698
      %v715 = vmul.f32 %v641, %v699
      %v716 = vmul.f32 %v643, %v700
      %v717 = vmul.f32 %v645, %v701
      %v718 = vmul.f32 %v647, %v702
      %v719 = vmul.f32 %v649, %v703
      %v720 = vmul.f32 %v651, %v704
      %v721 = vmul.f32 %v653, %v705
      %v722 = vmul.f32 %v655, %v706
      %v723 = vmul.f32 %v657, %v707
      %v724 = vmul.f32 %v659, %v708
      %v725 = vmul.f32 %v661, %v709
      %v726 = vadd.f32 %v710, %v711
      %v727 = vadd.f32 %v726, %v712
      %v728 = vadd.f32 %v727, %v713
      %v729 = vadd.f32 %v728, %v714
      %v730 = vadd.f32 %v729, %v715
      %v731 = vadd.f32 %v730, %v716
      %v732 = vadd.f32 %v731, %v717
      %v733 = vadd.f32 %v732, %v718
      %v734 = vadd.f32 %v733, %v719
      %v735 = vadd.f32 %v734, %v720
      %v736 = vadd.f32 %v735, %v721
      %v737 = vadd.f32 %v736, %v722
      %v738 = vadd.f32 %v737, %v723
      %v739 = vadd.f32 %v738, %v724
      %v740 = vadd.f32 %v739, %v725
      %v741 = vrot.slane %v740, 4
      %v742 = vadd.f32 %v740, %v741
      %v743 = vrot.slane %v742, 2
      %v744 = vadd.f32 %v742, %v743
      %v745 = vrot.slane %v744, 1
      %v746 = vadd.f32 %v744, %v745
      %747 = vst [vmem:[%s231] sm:$0x1] %v746
      %748 = vmatprep.subr.mxu0 0.0
      %749 = vmatpush1.xpose.msra.mxu0 %v725
      %750 = vmatprep.subr.mxu0 0.0
      %751 = vmatpush1.xpose.msra.mxu0 %v724
      %752 = vmatprep.subr.mxu0 0.0
      %753 = vmatpush1.xpose.msra.mxu0 %v723
      %754 = vmatprep.subr.mxu0 0.0
      %755 = vmatpush1.xpose.msra.mxu0 %v722
      %756 = vmatprep.subr.mxu0 0.0
      %757 = vmatpush1.xpose.msra.mxu0 %v721
      %758 = vmatprep.subr.mxu0 0.0
      %759 = vmatpush1.xpose.msra.mxu0 %v720
      %760 = vmatprep.subr.mxu0 0.0
      %761 = vmatpush1.xpose.msra.mxu0 %v719
      %762 = vmatprep.subr.mxu0 0.0
      %763 = vmatpush1.xpose.msra.mxu0 %v718
      %764 = vmatprep.subr.mxu0 0.0
      %765 = vmatpush1.xpose.msra.mxu0 %v717
      %766 = vmatprep.subr.mxu0 0.0
      %767 = vmatpush1.xpose.msra.mxu0 %v716
      %768 = vmatprep.subr.mxu0 0.0
      %769 = vmatpush1.xpose.msra.mxu0 %v715
      %770 = vmatprep.subr.mxu0 0.0
      %771 = vmatpush1.xpose.msra.mxu0 %v714
      %772 = vmatprep.subr.mxu0 0.0
      %773 = vmatpush1.xpose.msra.mxu0 %v713
      %774 = vmatprep.subr.mxu0 0.0
      %775 = vmatpush1.xpose.msra.mxu0 %v712
      %776 = vmatprep.subr.mxu0 0.0
      %777 = vmatpush1.xpose.msra.mxu0 %v711
      %778 = vmatprep.subr.mxu0 0.0
      %779 = vmatpush1.xpose.msra.mxu0 %v710
      %780 = vmatprep.subr.mxu0 0.0
      %781 = vmatpush2.xpose.msra.mxu0 0.0
      %782 = vmatprep.subr.mxu0 0.0
      %783 = vmatpush2.xpose.msra.mxu0 0.0
      %784 = vmatprep.subr.mxu0 0.0
      %785 = vmatpush2.xpose.msra.mxu0 0.0
      %786 = vmatprep.subr.mxu0 0.0
      %787 = vmatpush2.xpose.msra.mxu0 0.0
      %788 = vmatprep.subr.mxu0 0.0
      %789 = vmatpush2.xpose.msra.mxu0 0.0
      %790 = vmatprep.subr.mxu0 0.0
      %791 = vmatpush2.xpose.msra.mxu0 0.0
      %792 = vmatprep.subr.mxu0 0.0
      %793 = vmatpush2.xpose.msra.mxu0 0.0
      %794 = vmatprep.subr.mxu0 0.0
      %795 = vmatpush2.xpose.msra.mxu0 0.0
      %796 = vmatprep.subr.mxu0 0.0
      %797 = vmatpush2.xpose.msra.mxu0 0.0
      %798 = vmatprep.subr.mxu0 0.0
      %799 = vmatpush2.xpose.msra.mxu0 0.0
      %800 = vmatprep.subr.mxu0 0.0
      %801 = vmatpush2.xpose.msra.mxu0 0.0
      %802 = vmatprep.subr.mxu0 0.0
      %803 = vmatpush2.xpose.msra.mxu0 0.0
      %804 = vmatprep.subr.mxu0 0.0
      %805 = vmatpush2.xpose.msra.mxu0 0.0
      %806 = vmatprep.subr.mxu0 0.0
      %807 = vmatpush2.xpose.msra.mxu0 0.0
      %808 = vmatprep.subr.mxu0 0.0
      %809 = vmatpush2.xpose.msra.mxu0 0.0
      %810 = vmatprep.subr.mxu0 0.0
      %811 = vmatpush2.xpose.msra.mxu0 0.0
      %812 = vmatprep.mubr.f32.mxu0 0.0
      %813 = vmatmul.mubr.f32.gmra.mxu0 %v348
      %v814 = vpop.f32.mrf.mxu0
      %v815 = vadd.f32 0.0, %v814
      %v816 = vpop.f32.mrf.mxu0
      %817 = vmatprep.mubr.f32.mxu0 0.0
      %818 = vmatmul.mubr.f32.gmra.mxu0 %v353
      %v819 = vpop.f32.mrf.mxu0
      %v820 = vadd.f32 0.0, %v819
      %v821 = vpop.f32.mrf.mxu0
      %822 = vdwg.mxu0
      %823 = vst [vmem:[%s224] sm:$0xff] %v815
      %824 = vst [vmem:[%s224 + $0x8] sm:$0xff] %v820
      %p825 = scmp.lt.s32.totalorder %s19, 1
      %s826 = scalar_select %p825, %s19, 1
      %p827 = scmp.lt.s32.totalorder %s20, 3
      %s828 = scalar_select %p827, %s20, 3
      %s829 = smul.addr %s828, 2
      %s830 = smul.addr %s826, 8
      %s831 = sadd.s32 %s829, %s830
      %s832 = smul.addr %s831, 8
      %s833 = scalar_lea.vmem %s2, %s832
      %p834 = scmp.lt.s32.totalorder %s19, 1
      %s835 = scalar_select %p834, %s19, 1
      %p836 = scmp.lt.s32.totalorder %s20, 3
      %s837 = scalar_select %p836, %s20, 3
      %s838 = smul.addr %s835, 4
      %s839 = sadd.s32 %s837, %s838
      %s840 = scalar_lea.vmem %s3, %s839
      // Predicated region
      $region29: #{downsample_forward.1} parent=27 // pred_check
        %p841 = pneg %p99
      $region30: #{downsample_forward.1} parent=27 // pred_check_branch
        %843 = sbr.rel (%p841) target = $region32
      $region31: #{downsample_forward.1} parent=27 // pred_region
        _
      $region32: #{downsample_forward.1} parent=27 // pred_fallthru
        _
      // Predicated region
      $region33: #{downsample_forward.1} parent=27 // pred_check
        %p844 = pneg %p127
      $region34: #{downsample_forward.1} parent=27 // pred_check_branch
        %846 = sbr.rel (%p844) target = $region36
      $region35: #{downsample_forward.1} parent=27 // pred_region
        _
      $region36: #{downsample_forward.1} parent=27 // pred_fallthru
        _
    $region28: #{downsample_forward.1} parent=5 // pred_fallthru
      _
    %p847 = scmp.le.s32.totalorder 2, %s10
    // Predicated region
    $region37: #{downsample_forward.1} parent=5 // pred_check
      %p848 = pneg %p847
    $region38: #{downsample_forward.1} parent=5 // pred_check_branch
      %850 = sbr.rel (%p848) target = $region40
    $region39: #{downsample_forward.1} parent=5 // pred_region
      %s851 = ssub.s32 %s10, 2
      // Predicated region
      $region41: #{downsample_forward.1} parent=39 // pred_check
        %p852 = pneg %p105
      $region42: #{downsample_forward.1} parent=39 // pred_check_branch
        %854 = sbr.rel (%p852) target = $region44
      $region43: #{downsample_forward.1} parent=39 // pred_region
        %p855 = scmp.lt.s32.totalorder %s21, 1
        %s856 = scalar_select %p855, %s21, 1
        %p857 = scmp.lt.s32.totalorder %s22, 3
        %s858 = scalar_select %p857, %s22, 3
        %s859 = smul.addr %s858, 2
        %s860 = smul.addr %s856, 8
        %s861 = sadd.s32 %s859, %s860
        %s862 = smul.addr %s861, 8
        %s863 = scalar_lea.vmem %s2, %s862
      $region44: #{downsample_forward.1} parent=39 // pred_fallthru
        _
      // Predicated region
      $region45: #{downsample_forward.1} parent=39 // pred_check
        %p864 = pneg %p133
      $region46: #{downsample_forward.1} parent=39 // pred_check_branch
        %866 = sbr.rel (%p864) target = $region48
      $region47: #{downsample_forward.1} parent=39 // pred_region
        %p867 = scmp.lt.s32.totalorder %s21, 1
        %s868 = scalar_select %p867, %s21, 1
        %p869 = scmp.lt.s32.totalorder %s22, 3
        %s870 = scalar_select %p869, %s22, 3
        %s871 = smul.addr %s868, 4
        %s872 = sadd.s32 %s870, %s871
        %s873 = scalar_lea.vmem %s3, %s872
      $region48: #{downsample_forward.1} parent=39 // pred_fallthru
        _
    $region40: #{downsample_forward.1} parent=5 // pred_fallthru
      _
  $region6: #{downsample_forward.1} parent=0 // loop_footer
    %s14 = sadd.s32 1, %s10
  $region7: #{downsample_forward.1} parent=0 // loop_footer_branch
    %9 = sbr.rel target = $region3
  $region8: #{downsample_forward.1} parent=0 // loop_exit
    _

</llo_original>
